<compile_context>
chip_gen: v5e
topology: v5e:2x2
jax: 0.10.0
libtpu: 0.0.40
codegen_flags: <defaults>
</compile_context>

<pallas_src>
import functools

import jax
import jax.numpy as jnp
from jax.experimental import pallas as pl
from jax.experimental.pallas import tpu as pltpu

N_OUT_PAD = 8         # stored output lanes (action_dim padded up to a sublane-friendly 8)
_NEG_BIG = -1e30      # padded-logit bias: exp(-1e30 - m) underflows to exactly 0 in f32


def _round_up(x, m):
    return (x + m - 1) // m * m


def policy_net_kernel(x_ref, w1_ref, b1_ref, w2_ref, b2_ref, o_ref):
    # fc1 + relu.  bf16 operands into the MXU, f32 accumulation.
    # K=state_dim=4 leaves the MXU contraction dim mostly idle, but the kernel
    # is HBM/step-overhead bound at these shapes, so MXU-shape tuning is noise.
    x = x_ref[...].astype(w1_ref.dtype)
    h = jnp.dot(x, w1_ref[...], preferred_element_type=jnp.float32) + b1_ref[...]
    h = jnp.maximum(h, 0.0)

    # fc2 into the (narrow) padded logit space.  Padded columns have zero
    # weights and a -1e30 bias, so they drop out of the softmax below.
    logits = (
        jnp.dot(h.astype(w2_ref.dtype), w2_ref[...], preferred_element_type=jnp.float32)
        + b2_ref[...]
    )

    # Numerically stable softmax over the action (lane) dimension.
    # Exact division: denom is only (b_tile, 1), and exact normalization is
    # needed downstream (log-probs / categorical sampling in SAC).
    m = jnp.max(logits, axis=1, keepdims=True)
    e = jnp.exp(logits - m)
    denom = jnp.sum(e, axis=1, keepdims=True)
    o_ref[...] = (e / denom).astype(o_ref.dtype)


def prepare_params(w1, b1, w2, b2, action_dim=None):
    """One-time parameter prep (do this outside the rollout/training step).

    Pads fc2 to N_OUT_PAD output columns (zero weights, -1e30 bias for the
    padded columns) and casts biases to f32.
    """
    if action_dim is None:
        action_dim = w2.shape[1]
    hidden_dim = w2.shape[1 - 1]
    w2p = jnp.zeros((hidden_dim, N_OUT_PAD), w2.dtype).at[:, :action_dim].set(w2)
    b2p = (
        jnp.full((1, N_OUT_PAD), _NEG_BIG, jnp.float32)
        .at[:, :action_dim]
        .set(b2.reshape(1, -1).astype(jnp.float32))
    )
    b1p = b1.reshape(1, -1).astype(jnp.float32)
    return w1, b1p, w2p, b2p


def policy_net_forward(x, w1, b1, w2p, b2p, *, action_dim=2, b_tile=2048):
    """softmax(relu(x @ w1 + b1) @ w2 + b2, axis=1) -> (B, action_dim) f32 probs.

    Expects params already run through prepare_params().
    """
    B, state_dim = x.shape
    hidden_dim = w1.shape[1]

    # --- batch tiling ---------------------------------------------------------
    b_tile = min(b_tile, _round_up(B, 8))      # keep sublane dim a multiple of 8
    B_pad = _round_up(B, b_tile)
    if B_pad != B:
        x = jnp.pad(x, ((0, B_pad - B), (0, 0)))
    grid = (B_pad // b_tile,)

    out = pl.pallas_call(
        policy_net_kernel,
        # Narrow stored output: 8 lanes instead of a 128-lane padded slab.
        out_shape=jax.ShapeDtypeStruct((B_pad, N_OUT_PAD), jnp.float32),
        grid_spec=pltpu.PrefetchScalarGridSpec(
            num_scalar_prefetch=0,
            grid=grid,
            in_specs=[
                # x: streamed per batch tile (double-buffered by the pipeline).
                pl.BlockSpec((b_tile, state_dim), lambda i: (i, 0)),
                # weights/biases: constant index_map -> loaded once, VMEM-resident.
                pl.BlockSpec((state_dim, hidden_dim), lambda i: (0, 0)),
                pl.BlockSpec((1, hidden_dim), lambda i: (0, 0)),
                pl.BlockSpec((hidden_dim, N_OUT_PAD), lambda i: (0, 0)),
                pl.BlockSpec((1, N_OUT_PAD), lambda i: (0, 0)),
            ],
            out_specs=pl.BlockSpec((b_tile, N_OUT_PAD), lambda i: (i, 0)),
        ),
        compiler_params=pltpu.CompilerParams(
            # Batch axis is independent: lets Mosaic shard it across the two
            # TensorCores on v7x (no-op on v5e/v6e).
            dimension_semantics=("parallel",),
        ),
    )(x, w1, b1, w2p, b2p)

    # Drop batch padding and the padded action columns.
    return out[:B, :action_dim]


def init_params(key, state_dim, hidden_dim, action_dim, param_dtype=jnp.bfloat16):
    """torch.nn.Linear-style U(-1/sqrt(fan_in), 1/sqrt(fan_in)) init.

    Weights are (in, out) == W.T relative to PyTorch's (out, in); weights in
    `param_dtype` (bf16 MXU path), biases kept in f32.
    """
    k1, k2, k3, k4 = jax.random.split(key, 4)
    bound1 = 1.0 / jnp.sqrt(jnp.float32(state_dim))
    bound2 = 1.0 / jnp.sqrt(jnp.float32(hidden_dim))
    w1 = jax.random.uniform(k1, (state_dim, hidden_dim), jnp.float32, -bound1, bound1)
    b1 = jax.random.uniform(k2, (1, hidden_dim), jnp.float32, -bound1, bound1)
    w2 = jax.random.uniform(k3, (hidden_dim, action_dim), jnp.float32, -bound2, bound2)
    b2 = jax.random.uniform(k4, (1, action_dim), jnp.float32, -bound2, bound2)
    return w1.astype(param_dtype), b1, w2.astype(param_dtype), b2


if __name__ == "__main__":
    # CartPole-v0: state_dim=4, action_dim=2; hidden_dim=128 as in the module.
    state_dim, hidden_dim, action_dim = 4, 128, 2
    batch = 200  # not a multiple of the tile -> exercises the pad-and-slice path

    key = jax.random.PRNGKey(0)
    kx, kp = jax.random.split(key)
    x = jax.random.normal(kx, (batch, state_dim), jnp.float32)
    w1, b1, w2, b2 = init_params(kp, state_dim, hidden_dim, action_dim)

    # One-time parameter prep (padding + casts) hoisted out of the forward.
    w1p, b1p, w2p, b2p = prepare_params(w1, b1, w2, b2, action_dim=action_dim)

    # b_tile=128 here so the small demo still runs a 2-step pipelined grid;
    # for large vectorized-env batches the default b_tile=2048 applies.
    fwd = jax.jit(
        functools.partial(policy_net_forward, action_dim=action_dim, b_tile=128)
    )
    out = jax.block_until_ready(fwd(x, w1p, b1p, w2p, b2p))

    # Pure-JAX reference using the same bf16-weight / f32-accumulate math.
    xb = x.astype(w1.dtype)
    h_ref = jnp.maximum(jnp.dot(xb, w1, preferred_element_type=jnp.float32) + b1, 0.0)
    logits_ref = jnp.dot(h_ref.astype(w2.dtype), w2, preferred_element_type=jnp.float32) + b2
    ref = jax.nn.softmax(logits_ref, axis=1)

    assert out.shape == (batch, action_dim)
    assert bool(jnp.all(jnp.isfinite(out)))
    # Tolerance covers bf16 matmul operands; softmax divide is exact now.
    assert jnp.allclose(out, ref, atol=2e-3), "mismatch vs JAX reference"
    assert jnp.allclose(jnp.sum(out, axis=1), 1.0, atol=1e-4), "rows must sum to 1"

    print("KERNEL_OK")
</pallas_src>

<mosaic_0001>
module attributes {stable_mosaic.version = 11 : i64} {
  func.func @policy_net_kernel(%arg0: i32, %arg1: memref<128x4xf32, #tpu.memory_space<vmem>>, %arg2: memref<4x128xbf16, #tpu.memory_space<vmem>>, %arg3: memref<1x128xf32, #tpu.memory_space<vmem>>, %arg4: memref<128x8xbf16, #tpu.memory_space<vmem>>, %arg5: memref<1x8xf32, #tpu.memory_space<vmem>>, %arg6: memref<128x8xf32, #tpu.memory_space<vmem>>) attributes {dimension_semantics = [#tpu.dimension_semantics<parallel>], iteration_bounds = array<i64: 2>, scalar_prefetch = 0 : i64, scratch_operands = 0 : i64, tpu.core_type = #tpu.core_type<tc>, window_params = [{transform_indices = @transform_0, window_bounds = array<i64: 128, 4>}, {pipeline_mode = #tpu.pipeline_mode<synchronous>, transform_indices = @transform_1, window_bounds = array<i64: 4, 128>}, {pipeline_mode = #tpu.pipeline_mode<synchronous>, transform_indices = @transform_2, window_bounds = array<i64: 1, 128>}, {pipeline_mode = #tpu.pipeline_mode<synchronous>, transform_indices = @transform_3, window_bounds = array<i64: 128, 8>}, {pipeline_mode = #tpu.pipeline_mode<synchronous>, transform_indices = @transform_4, window_bounds = array<i64: 1, 8>}, {transform_indices = @transform_5, window_bounds = array<i64: 128, 8>}]} {
    %c0 = arith.constant 0 : index
    %c0_0 = arith.constant 0 : index
    %0 = vector.load %arg1[%c0, %c0_0] : memref<128x4xf32, #tpu.memory_space<vmem>>, vector<128x4xf32>
    %1 = arith.truncf %0 : vector<128x4xf32> to vector<128x4xbf16>
    %c0_1 = arith.constant 0 : index
    %c0_2 = arith.constant 0 : index
    %2 = vector.load %arg2[%c0_1, %c0_2] : memref<4x128xbf16, #tpu.memory_space<vmem>>, vector<4x128xbf16>
    %cst = arith.constant dense<0.000000e+00> : vector<128x128xf32>
    %3 = tpu.matmul %1, %2, %cst {dimension_numbers = #tpu.dot_dimension_numbers<[1], [0], [0], [1], [0, 0, 1, 1], [], []>} : vector<128x4xbf16>, vector<4x128xbf16>, vector<128x128xf32> -> vector<128x128xf32>
    %c0_3 = arith.constant 0 : index
    %c0_4 = arith.constant 0 : index
    %4 = vector.load %arg3[%c0_3, %c0_4] : memref<1x128xf32, #tpu.memory_space<vmem>>, vector<1x128xf32>
    %5 = vector.broadcast %4 : vector<1x128xf32> to vector<128x128xf32>
    %6 = arith.addf %3, %5 : vector<128x128xf32>
    %cst_5 = arith.constant 0.000000e+00 : f32
    %7 = vector.broadcast %cst_5 : f32 to vector<128x128xf32>
    %8 = arith.maximumf %6, %7 : vector<128x128xf32>
    %9 = arith.truncf %8 : vector<128x128xf32> to vector<128x128xbf16>
    %c0_6 = arith.constant 0 : index
    %c0_7 = arith.constant 0 : index
    %10 = vector.load %arg4[%c0_6, %c0_7] : memref<128x8xbf16, #tpu.memory_space<vmem>>, vector<128x8xbf16>
    %cst_8 = arith.constant dense<0.000000e+00> : vector<128x8xf32>
    %11 = tpu.matmul %9, %10, %cst_8 {dimension_numbers = #tpu.dot_dimension_numbers<[1], [0], [0], [1], [0, 0, 1, 1], [], []>} : vector<128x128xbf16>, vector<128x8xbf16>, vector<128x8xf32> -> vector<128x8xf32>
    %c0_9 = arith.constant 0 : index
    %c0_10 = arith.constant 0 : index
    %12 = vector.load %arg5[%c0_9, %c0_10] : memref<1x8xf32, #tpu.memory_space<vmem>>, vector<1x8xf32>
    %13 = vector.broadcast %12 : vector<1x8xf32> to vector<128x8xf32>
    %14 = arith.addf %11, %13 : vector<128x8xf32>
    %cst_11 = arith.constant dense<0xFF800000> : vector<128xf32>
    %15 = vector.multi_reduction <maximumf>, %14, %cst_11 [1] : vector<128x8xf32> to vector<128xf32>
    %16 = vector.shape_cast %15 : vector<128xf32> to vector<128x1xf32>
    %17 = vector.broadcast %16 : vector<128x1xf32> to vector<128x8xf32>
    %18 = arith.subf %14, %17 : vector<128x8xf32>
    %19 = math.exp %18 : vector<128x8xf32>
    %cst_12 = arith.constant dense<0.000000e+00> : vector<128xf32>
    %20 = vector.multi_reduction <add>, %19, %cst_12 [1] : vector<128x8xf32> to vector<128xf32>
    %21 = vector.shape_cast %20 : vector<128xf32> to vector<128x1xf32>
    %22 = vector.broadcast %21 : vector<128x1xf32> to vector<128x8xf32>
    %23 = arith.divf %19, %22 : vector<128x8xf32>
    %c0_13 = arith.constant 0 : index
    %c0_14 = arith.constant 0 : index
    %24 = vector.load %arg6[%c0_13, %c0_14] : memref<128x8xf32, #tpu.memory_space<vmem>>, vector<128x8xf32>
    tpu.vector_store %arg6[%c0_13, %c0_14], %23 {strides = array<i32>} : memref<128x8xf32, #tpu.memory_space<vmem>>, vector<128x8xf32>,
    return
  }
  func.func @transform_0(%arg0: i32) -> (i32, i32) {
    %c0_i32 = arith.constant 0 : i32
    %c0_i32_0 = arith.constant 0 : i32
    return %arg0, %c0_i32 : i32, i32
  }
  func.func @transform_1(%arg0: i32) -> (i32, i32) {
    %c0_i32 = arith.constant 0 : i32
    %c0_i32_0 = arith.constant 0 : i32
    %c0_i32_1 = arith.constant 0 : i32
    return %c0_i32, %c0_i32_0 : i32, i32
  }
  func.func @transform_2(%arg0: i32) -> (i32, i32) {
    %c0_i32 = arith.constant 0 : i32
    %c0_i32_0 = arith.constant 0 : i32
    %c0_i32_1 = arith.constant 0 : i32
    return %c0_i32, %c0_i32_0 : i32, i32
  }
  func.func @transform_3(%arg0: i32) -> (i32, i32) {
    %c0_i32 = arith.constant 0 : i32
    %c0_i32_0 = arith.constant 0 : i32
    %c0_i32_1 = arith.constant 0 : i32
    return %c0_i32, %c0_i32_0 : i32, i32
  }
  func.func @transform_4(%arg0: i32) -> (i32, i32) {
    %c0_i32 = arith.constant 0 : i32
    %c0_i32_0 = arith.constant 0 : i32
    %c0_i32_1 = arith.constant 0 : i32
    return %c0_i32, %c0_i32_0 : i32, i32
  }
  func.func @transform_5(%arg0: i32) -> (i32, i32) {
    %c0_i32 = arith.constant 0 : i32
    %c0_i32_0 = arith.constant 0 : i32
    return %arg0, %c0_i32 : i32, i32
  }
}

</mosaic_0001>

<llo_original>
// kernel: policy_net_forward.1
$region0: #{policy_net_forward.1}
  #allocation0 [shape = 'u32[]', space=smem, size = 0x4, offset = 0x4, fixed_abs, tag = 'smem constant byte address 0x4 - core index']
  #allocation1 [shape = 'u32[72,128]{1,0:T(1,128)}', space=vmem, size = 0x9000, scoped, tag = 'internal scratch']
  %s0 = inlined_call_operand.vmem [shape: f32[256,4], index: 0, kind: input, shape index: {}]
  %s1 = inlined_call_operand.vmem [shape: bf16[4,128], index: 1, kind: input, shape index: {}]
  %s2 = inlined_call_operand.vmem [shape: f32[1,128], index: 2, kind: input, shape index: {}]
  %s3 = inlined_call_operand.vmem [shape: bf16[128,8], index: 3, kind: input, shape index: {}]
  %s4 = inlined_call_operand.vmem [shape: f32[1,8], index: 4, kind: input, shape index: {}]
  %s5 = inlined_call_operand.vmem [shape: f32[256,8], index: 5, kind: output, shape index: {}]
  %s6 = sld [smem:[#allocation0]]
  $region53: #{policy_net_forward.1} parent=0
    _
  %s8 = ssub.s32 1, %s6
  %s9 = scalar_select 0, %s8, %s6
  loop: start=0, step=1, limit=4
  $region2: #{policy_net_forward.1} parent=0 // loop_pre_header
    _
  $region3: #{policy_net_forward.1} parent=0 // loop_header
    %s11 = sphi 0, %s15
    %p12 = scmp.ge.s32.totalorder %s11, 4
    %s21 = sphi 0, %s23
    %s24 = sphi 0, %s21
    %s25 = sphi 0, %s24
    %s41 = sphi 0, %s25
    %s45 = sphi 0, %s45
    %s47 = sphi 0, %s45
    %s48 = sphi 0, %s47
    %s62 = sphi 0, %s48
    %s66 = sphi 0, %s66
    %s68 = sphi 0, %s66
    %s69 = sphi 0, %s68
    %s83 = sphi 0, %s69
    %s87 = sphi 0, %s87
    %s89 = sphi 0, %s87
    %s90 = sphi 0, %s89
    %s104 = sphi 0, %s90
    %s108 = sphi 0, %s108
    %s110 = sphi 0, %s108
    %s111 = sphi 0, %s110
    %s125 = sphi 0, %s111
    %s131 = sphi 0, %s133
    %s134 = sphi 0, %s131
    %s135 = sphi 0, %s134
    %s151 = sphi 0, %s135
  $region4: #{policy_net_forward.1} parent=0 // loop_header_branch
    %14 = sbr.rel (%p12) target = $region8
  $region5: #{policy_net_forward.1} parent=0 // loop_body
    %s16 = ssub.s32 %s11, 1
    %s17 = ssub.s32 %s11, 2
    %s18 = sadd.s32 %s11, 1
    %s19 = ssub.s32 %s11, %s18
    %p20 = scmp.eq.s32.totalorder %s19, 0
    %s22 = sadd.s32 %s21, 1
    %s23 = scalar_select %p20, %s21, %s22
    %p26 = pneg %p20
    %p27 = scmp.eq.s32.totalorder %s11, 1
    %p28 = por %p26, %p27
    %p29 = scmp.ne.s32.totalorder %s21, %s24
    %p30 = scmp.eq.s32.totalorder %s11, 0
    %p31 = por %p29, %p30
    %p32 = scmp.ne.s32.totalorder %s21, %s24
    %p33 = scmp.eq.s32.totalorder %s16, 1
    %p34 = por %p32, %p33
    %p35 = scmp.ne.s32.totalorder %s24, %s25
    %p36 = scmp.eq.s32.totalorder %s16, 0
    %p37 = por %p35, %p36
    %p38 = scmp.ne.s32.totalorder %s24, %s25
    %p39 = scmp.eq.s32.totalorder %s17, 1
    %p40 = por %p38, %p39
    %p42 = scmp.ne.s32.totalorder %s25, %s41
    %p43 = scmp.eq.s32.totalorder %s17, 0
    %p44 = por %p42, %p43
    %s46 = sadd.s32 %s45, 1
    %p49 = scmp.eq.s32.totalorder %s11, 1
    %p50 = scmp.ne.s32.totalorder %s45, %s47
    %p51 = scmp.eq.s32.totalorder %s11, 0
    %p52 = por %p50, %p51
    %p53 = scmp.ne.s32.totalorder %s45, %s47
    %p54 = scmp.eq.s32.totalorder %s16, 1
    %p55 = por %p53, %p54
    %p56 = scmp.ne.s32.totalorder %s47, %s48
    %p57 = scmp.eq.s32.totalorder %s16, 0
    %p58 = por %p56, %p57
    %p59 = scmp.ne.s32.totalorder %s47, %s48
    %p60 = scmp.eq.s32.totalorder %s17, 1
    %p61 = por %p59, %p60
    %p63 = scmp.ne.s32.totalorder %s48, %s62
    %p64 = scmp.eq.s32.totalorder %s17, 0
    %p65 = por %p63, %p64
    %s67 = sadd.s32 %s66, 1
    %p70 = scmp.eq.s32.totalorder %s11, 1
    %p71 = scmp.ne.s32.totalorder %s66, %s68
    %p72 = scmp.eq.s32.totalorder %s11, 0
    %p73 = por %p71, %p72
    %p74 = scmp.ne.s32.totalorder %s66, %s68
    %p75 = scmp.eq.s32.totalorder %s16, 1
    %p76 = por %p74, %p75
    %p77 = scmp.ne.s32.totalorder %s68, %s69
    %p78 = scmp.eq.s32.totalorder %s16, 0
    %p79 = por %p77, %p78
    %p80 = scmp.ne.s32.totalorder %s68, %s69
    %p81 = scmp.eq.s32.totalorder %s17, 1
    %p82 = por %p80, %p81
    %p84 = scmp.ne.s32.totalorder %s69, %s83
    %p85 = scmp.eq.s32.totalorder %s17, 0
    %p86 = por %p84, %p85
    %s88 = sadd.s32 %s87, 1
    %p91 = scmp.eq.s32.totalorder %s11, 1
    %p92 = scmp.ne.s32.totalorder %s87, %s89
    %p93 = scmp.eq.s32.totalorder %s11, 0
    %p94 = por %p92, %p93
    %p95 = scmp.ne.s32.totalorder %s87, %s89
    %p96 = scmp.eq.s32.totalorder %s16, 1
    %p97 = por %p95, %p96
    %p98 = scmp.ne.s32.totalorder %s89, %s90
    %p99 = scmp.eq.s32.totalorder %s16, 0
    %p100 = por %p98, %p99
    %p101 = scmp.ne.s32.totalorder %s89, %s90
    %p102 = scmp.eq.s32.totalorder %s17, 1
    %p103 = por %p101, %p102
    %p105 = scmp.ne.s32.totalorder %s90, %s104
    %p106 = scmp.eq.s32.totalorder %s17, 0
    %p107 = por %p105, %p106
    %s109 = sadd.s32 %s108, 1
    %p112 = scmp.eq.s32.totalorder %s11, 1
    %p113 = scmp.ne.s32.totalorder %s108, %s110
    %p114 = scmp.eq.s32.totalorder %s11, 0
    %p115 = por %p113, %p114
    %p116 = scmp.ne.s32.totalorder %s108, %s110
    %p117 = scmp.eq.s32.totalorder %s16, 1
    %p118 = por %p116, %p117
    %p119 = scmp.ne.s32.totalorder %s110, %s111
    %p120 = scmp.eq.s32.totalorder %s16, 0
    %p121 = por %p119, %p120
    %p122 = scmp.ne.s32.totalorder %s110, %s111
    %p123 = scmp.eq.s32.totalorder %s17, 1
    %p124 = por %p122, %p123
    %p126 = scmp.ne.s32.totalorder %s111, %s125
    %p127 = scmp.eq.s32.totalorder %s17, 0
    %p128 = por %p126, %p127
    %s129 = ssub.s32 %s11, %s18
    %p130 = scmp.eq.s32.totalorder %s129, 0
    %s132 = sadd.s32 %s131, 1
    %s133 = scalar_select %p130, %s131, %s132
    %p136 = pneg %p130
    %p137 = scmp.eq.s32.totalorder %s11, 1
    %p138 = por %p136, %p137
    %p139 = scmp.ne.s32.totalorder %s131, %s134
    %p140 = scmp.eq.s32.totalorder %s11, 0
    %p141 = por %p139, %p140
    %p142 = scmp.ne.s32.totalorder %s131, %s134
    %p143 = scmp.eq.s32.totalorder %s16, 1
    %p144 = por %p142, %p143
    %p145 = scmp.ne.s32.totalorder %s134, %s135
    %p146 = scmp.eq.s32.totalorder %s16, 0
    %p147 = por %p145, %p146
    %p148 = scmp.ne.s32.totalorder %s134, %s135
    %p149 = scmp.eq.s32.totalorder %s17, 1
    %p150 = por %p148, %p149
    %p152 = scmp.ne.s32.totalorder %s135, %s151
    %p153 = scmp.eq.s32.totalorder %s17, 0
    %p154 = por %p152, %p153
    %p155 = scmp.le.s32.totalorder 1, %s11
    %p156 = scmp.lt.s32.totalorder %s11, 3
    %p157 = pnand %p155, %p156
    %p158 = pneg %p157
    // Predicated region
    $region9: #{policy_net_forward.1} parent=5 // pred_check
      _
    $region10: #{policy_net_forward.1} parent=5 // pred_check_branch
      %160 = sbr.rel (%p157) target = $region12
    $region11: #{policy_net_forward.1} parent=5 // pred_region
      %s161 = ssub.s32 %s11, 1
      // Predicated region
      $region13: #{policy_net_forward.1} parent=11 // pred_check
        %p162 = pneg %p58
      $region14: #{policy_net_forward.1} parent=11 // pred_check_branch
        %164 = sbr.rel (%p162) target = $region16
      $region15: #{policy_net_forward.1} parent=11 // pred_region
        _
      $region16: #{policy_net_forward.1} parent=11 // pred_fallthru
        _
      // Predicated region
      $region17: #{policy_net_forward.1} parent=11 // pred_check
        %p165 = pneg %p79
      $region18: #{policy_net_forward.1} parent=11 // pred_check_branch
        %167 = sbr.rel (%p165) target = $region20
      $region19: #{policy_net_forward.1} parent=11 // pred_region
        _
      $region20: #{policy_net_forward.1} parent=11 // pred_fallthru
        _
      // Predicated region
      $region21: #{policy_net_forward.1} parent=11 // pred_check
        %p168 = pneg %p100
      $region22: #{policy_net_forward.1} parent=11 // pred_check_branch
        %170 = sbr.rel (%p168) target = $region24
      $region23: #{policy_net_forward.1} parent=11 // pred_region
        _
      $region24: #{policy_net_forward.1} parent=11 // pred_fallthru
        _
      // Predicated region
      $region25: #{policy_net_forward.1} parent=11 // pred_check
        %p171 = pneg %p121
      $region26: #{policy_net_forward.1} parent=11 // pred_check_branch
        %173 = sbr.rel (%p171) target = $region28
      $region27: #{policy_net_forward.1} parent=11 // pred_region
        _
      $region28: #{policy_net_forward.1} parent=11 // pred_fallthru
        _
    $region12: #{policy_net_forward.1} parent=5 // pred_fallthru
      _
    %p174 = scmp.lt.s32.totalorder %s11, 2
    // Predicated region
    $region29: #{policy_net_forward.1} parent=5 // pred_check
      %p175 = pneg %p174
    $region30: #{policy_net_forward.1} parent=5 // pred_check_branch
      %177 = sbr.rel (%p175) target = $region32
    $region31: #{policy_net_forward.1} parent=5 // pred_region
      // Predicated region
      $region33: #{policy_net_forward.1} parent=31 // pred_check
        %p178 = pneg %p31
      $region34: #{policy_net_forward.1} parent=31 // pred_check_branch
        %180 = sbr.rel (%p178) target = $region36
      $region35: #{policy_net_forward.1} parent=31 // pred_region
        %s181 = smul.u32 16, %s11
        %p182 = scmp.lt.s32.totalorder %s181, 31
        %s183 = scalar_select %p182, %s181, 31
        %s184 = smul.addr %s183, 8
        %s185 = scalar_lea.vmem %s0, %s184
        %s186 = smul.u32 16, %s11
      $region36: #{policy_net_forward.1} parent=31 // pred_fallthru
        _
    $region32: #{policy_net_forward.1} parent=5 // pred_fallthru
      _
    %p187 = scmp.le.s32.totalorder 1, %s11
    %p188 = scmp.lt.s32.totalorder %s11, 3
    %p189 = pnand %p187, %p188
    %p190 = pneg %p189
    // Predicated region
    $region37: #{policy_net_forward.1} parent=5 // pred_check
      _
    $region38: #{policy_net_forward.1} parent=5 // pred_check_branch
      %192 = sbr.rel (%p189) target = $region40
    $region39: #{policy_net_forward.1} parent=5 // pred_region
      %s193 = ssub.s32 %s11, 1
      %s194 = smul.u32 16, %s16
      %p195 = scmp.lt.s32.totalorder %s194, 31
      %s196 = scalar_select %p195, %s194, 31
      %s197 = smul.addr %s196, 8
      %s198 = scalar_lea.vmem %s0, %s197
      %p199 = pneg %p37
      %p200 = pneg %p34
      %p201 = pneg %p58
      %p202 = pneg %p55
      %p203 = pneg %p79
      %p204 = pneg %p76
      %p205 = pneg %p100
      %p206 = pneg %p97
      %p207 = pneg %p121
      %p208 = pneg %p118
      %p209 = pneg %p147
      %p210 = pneg %p144
      %s211 = smul.u32 16, %s16
      %p212 = scmp.lt.s32.totalorder %s211, 31
      %s213 = scalar_select %p212, %s211, 31
      %s214 = smul.addr %s213, 8
      %s215 = scalar_lea.vmem %s5, %s214
      %s216 = smul.u32 16, %s16
      %p217 = scmp.lt.s32.totalorder %s216, 31
      %s218 = scalar_select %p217, %s216, 31
      %s219 = smul.addr %s218, 8
      %s220 = scalar_lea.vmem %s0, %s219
      %s221 = smul.u32 16, %s16
      %s222 = smul.u32 16, %s16
      %p223 = scmp.lt.s32.totalorder %s222, 31
      %s224 = scalar_select %p223, %s222, 31
      %s225 = smul.addr %s224, 8
      %s226 = scalar_lea.vmem %s5, %s225
      %s227 = smul.u32 16, %s16
      %v229 = vld [vmem:[%s220] sm:$0xff]
      %v230 = vld [vmem:[%s220 + $0x8] sm:$0xff]
      %v231 = vld [vmem:[%s220 + $0x10] sm:$0xff]
      %v232 = vld [vmem:[%s220 + $0x18] sm:$0xff]
      %v233 = vld [vmem:[%s220 + $0x20] sm:$0xff]
      %v234 = vld [vmem:[%s220 + $0x28] sm:$0xff]
      %v235 = vld [vmem:[%s220 + $0x30] sm:$0xff]
      %v236 = vld [vmem:[%s220 + $0x38] sm:$0xff]
      %v237 = vld [vmem:[%s220 + $0x40] sm:$0xff]
      %v238 = vld [vmem:[%s220 + $0x48] sm:$0xff]
      %v239 = vld [vmem:[%s220 + $0x50] sm:$0xff]
      %v240 = vld [vmem:[%s220 + $0x58] sm:$0xff]
      %v241 = vld [vmem:[%s220 + $0x60] sm:$0xff]
      %v242 = vld [vmem:[%s220 + $0x68] sm:$0xff]
      %v243 = vld [vmem:[%s220 + $0x70] sm:$0xff]
      %v244 = vld [vmem:[%s220 + $0x78] sm:$0xff]
      %v245 = vpack.c.bf16 %v230, %v229
      %v246 = vpack.c.bf16 %v232, %v231
      %v247 = vpack.c.bf16 %v234, %v233
      %v248 = vpack.c.bf16 %v236, %v235
      %v249 = vpack.c.bf16 %v238, %v237
      %v250 = vpack.c.bf16 %v240, %v239
      %v251 = vpack.c.bf16 %v242, %v241
      %v252 = vpack.c.bf16 %v244, %v243
      %v253 = vld [vmem:[%s1] sm:$0x3]
      %v254 = vld [vmem:[%s2] sm:$0x1]
      %v256 = vperm.slane %v254, 0
      %vm258 = vcmask 31744
      %v260 = vsel %vm258, %v245, 0
      %v263 = vsel %vm258, %v246, 0
      %v266 = vsel %vm258, %v247, 0
      %v269 = vsel %vm258, %v248, 0
      %v272 = vsel %vm258, %v249, 0
      %v275 = vsel %vm258, %v250, 0
      %v278 = vsel %vm258, %v251, 0
      %v281 = vsel %vm258, %v252, 0
      %vm283 = vcmask 1041408
      %v285 = vsel %vm283, %v253, 0
      %287 = vmatpush.bf16.msra.mxu0 0
      %288 = vmatpush.bf16.msra.mxu0 0
      %289 = vmatpush.bf16.msra.mxu0 0
      %290 = vmatpush.bf16.msra.mxu0 0
      %291 = vmatpush.bf16.msra.mxu0 0
      %292 = vmatpush.bf16.msra.mxu0 0
      %293 = vmatpush.bf16.msra.mxu0 0
      %294 = vmatpush.bf16.msra.mxu0 %v285
      %295 = vmatmul.bf16.gmra.mxu0 %v260
      %v296 = vpop.f32.mrf.mxu0
      %v297 = vadd.f32 %v256, %v296
      %v298 = vpop.f32.mrf.mxu0
      %v299 = vadd.f32 %v256, %v298
      %300 = vmatmul.bf16.gmra.mxu0 %v263
      %v301 = vpop.f32.mrf.mxu0
      %v302 = vadd.f32 %v256, %v301
      %v303 = vpop.f32.mrf.mxu0
      %v304 = vadd.f32 %v256, %v303
      %305 = vmatmul.bf16.gmra.mxu0 %v266
      %v306 = vpop.f32.mrf.mxu0
      %v307 = vadd.f32 %v256, %v306
      %v308 = vpop.f32.mrf.mxu0
      %v309 = vadd.f32 %v256, %v308
      %310 = vmatmul.bf16.gmra.mxu0 %v269
      %v311 = vpop.f32.mrf.mxu0
      %v312 = vadd.f32 %v256, %v311
      %v313 = vpop.f32.mrf.mxu0
      %v314 = vadd.f32 %v256, %v313
      %315 = vmatmul.bf16.gmra.mxu0 %v272
      %v316 = vpop.f32.mrf.mxu0
      %v317 = vadd.f32 %v256, %v316
      %v318 = vpop.f32.mrf.mxu0
      %v319 = vadd.f32 %v256, %v318
      %320 = vmatmul.bf16.gmra.mxu0 %v275
      %v321 = vpop.f32.mrf.mxu0
      %v322 = vadd.f32 %v256, %v321
      %v323 = vpop.f32.mrf.mxu0
      %v324 = vadd.f32 %v256, %v323
      %325 = vmatmul.bf16.gmra.mxu0 %v278
      %v326 = vpop.f32.mrf.mxu0
      %v327 = vadd.f32 %v256, %v326
      %v328 = vpop.f32.mrf.mxu0
      %v329 = vadd.f32 %v256, %v328
      %330 = vmatmul.bf16.gmra.mxu0 %v281
      %v331 = vpop.f32.mrf.mxu0
      %v332 = vadd.f32 %v256, %v331
      %v333 = vpop.f32.mrf.mxu0
      %v334 = vadd.f32 %v256, %v333
      %335 = vdwg.mxu0
      %v336 = vmax.f32 %v297, 0.0
      %v337 = vmax.f32 %v299, 0.0
      %v338 = vmax.f32 %v302, 0.0
      %v339 = vmax.f32 %v304, 0.0
      %v340 = vmax.f32 %v307, 0.0
      %v341 = vmax.f32 %v309, 0.0
      %v342 = vmax.f32 %v312, 0.0
      %v343 = vmax.f32 %v314, 0.0
      %v344 = vmax.f32 %v317, 0.0
      %v345 = vmax.f32 %v319, 0.0
      %v346 = vmax.f32 %v322, 0.0
      %v347 = vmax.f32 %v324, 0.0
      %v348 = vmax.f32 %v327, 0.0
      %v349 = vmax.f32 %v329, 0.0
      %v350 = vmax.f32 %v332, 0.0
      %v351 = vmax.f32 %v334, 0.0
      %v352 = vpack.c.bf16 %v337, %v336
      %v353 = vpack.c.bf16 %v339, %v338
      %v354 = vpack.c.bf16 %v341, %v340
      %v355 = vpack.c.bf16 %v343, %v342
      %v356 = vpack.c.bf16 %v345, %v344
      %v357 = vpack.c.bf16 %v347, %v346
      %v358 = vpack.c.bf16 %v349, %v348
      %v359 = vpack.c.bf16 %v351, %v350
      %v360 = vld [vmem:[%s3] sm:$0xf]
      %v361 = vld [vmem:[%s3 + $0x4] sm:$0xf]
      %v362 = vld [vmem:[%s3 + $0x8] sm:$0xf]
      %v363 = vld [vmem:[%s3 + $0xc] sm:$0xf]
      %v364 = vld [vmem:[%s3 + $0x10] sm:$0xf]
      %v365 = vld [vmem:[%s3 + $0x14] sm:$0xf]
      %v366 = vld [vmem:[%s3 + $0x18] sm:$0xf]
      %v367 = vld [vmem:[%s3 + $0x1c] sm:$0xf]
      %v368 = vld [vmem:[%s3 + $0x20] sm:$0xf]
      %v369 = vld [vmem:[%s3 + $0x24] sm:$0xf]
      %v370 = vld [vmem:[%s3 + $0x28] sm:$0xf]
      %v371 = vld [vmem:[%s3 + $0x2c] sm:$0xf]
      %v372 = vld [vmem:[%s3 + $0x30] sm:$0xf]
      %v373 = vld [vmem:[%s3 + $0x34] sm:$0xf]
      %v374 = vld [vmem:[%s3 + $0x38] sm:$0xf]
      %v375 = vld [vmem:[%s3 + $0x3c] sm:$0xf]
      %v376 = vld [vmem:[%s4] sm:$0x1]
      %v378 = vperm.slane %v376, 0
      %v396 = vunpack.c.l.b16 %v360
      %v397 = vunpack.c.l.b16 %v361
      %v398 = vunpack.c.l.b16 %v362
      %v399 = vunpack.c.l.b16 %v363
      %v400 = vunpack.c.l.b16 %v364
      %v401 = vunpack.c.l.b16 %v365
      %v402 = vunpack.c.l.b16 %v366
      %v403 = vunpack.c.l.b16 %v367
      %v404 = vunpack.c.l.b16 %v368
      %v405 = vunpack.c.l.b16 %v369
      %v406 = vunpack.c.l.b16 %v370
      %v407 = vunpack.c.l.b16 %v371
      %v408 = vunpack.c.l.b16 %v372
      %v409 = vunpack.c.l.b16 %v373
      %v410 = vunpack.c.l.b16 %v374
      %v411 = vunpack.c.l.b16 %v375
      %v412 = vpack.c.b16 %v397, %v396
      %v413 = vpack.c.b16 %v399, %v398
      %v414 = vpack.c.b16 %v401, %v400
      %v415 = vpack.c.b16 %v403, %v402
      %v416 = vpack.c.b16 %v405, %v404
      %v417 = vpack.c.b16 %v407, %v406
      %v418 = vpack.c.b16 %v409, %v408
      %v419 = vpack.c.b16 %v411, %v410
      %428 = vmatpush.bf16.msra.mxu0 %v419
      %429 = vmatpush.bf16.msra.mxu0 %v418
      %430 = vmatpush.bf16.msra.mxu0 %v417
      %431 = vmatpush.bf16.msra.mxu0 %v416
      %432 = vmatpush.bf16.msra.mxu0 %v415
      %433 = vmatpush.bf16.msra.mxu0 %v414
      %434 = vmatpush.bf16.msra.mxu0 %v413
      %435 = vmatpush.bf16.msra.mxu0 %v412
      %436 = vmatmul.bf16.gmra.mxu0 %v352
      %v437 = vpop.f32.mrf.mxu0
      %v438 = vadd.f32 %v378, %v437
      %v439 = vpop.f32.mrf.mxu0
      %v440 = vadd.f32 %v378, %v439
      %441 = vmatmul.bf16.gmra.mxu0 %v353
      %v442 = vpop.f32.mrf.mxu0
      %v443 = vadd.f32 %v378, %v442
      %v444 = vpop.f32.mrf.mxu0
      %v445 = vadd.f32 %v378, %v444
      %446 = vmatmul.bf16.gmra.mxu0 %v354
      %v447 = vpop.f32.mrf.mxu0
      %v448 = vadd.f32 %v378, %v447
      %v449 = vpop.f32.mrf.mxu0
      %v450 = vadd.f32 %v378, %v449
      %451 = vmatmul.bf16.gmra.mxu0 %v355
      %v452 = vpop.f32.mrf.mxu0
      %v453 = vadd.f32 %v378, %v452
      %v454 = vpop.f32.mrf.mxu0
      %v455 = vadd.f32 %v378, %v454
      %456 = vmatmul.bf16.gmra.mxu0 %v356
      %v457 = vpop.f32.mrf.mxu0
      %v458 = vadd.f32 %v378, %v457
      %v459 = vpop.f32.mrf.mxu0
      %v460 = vadd.f32 %v378, %v459
      %461 = vmatmul.bf16.gmra.mxu0 %v357
      %v462 = vpop.f32.mrf.mxu0
      %v463 = vadd.f32 %v378, %v462
      %v464 = vpop.f32.mrf.mxu0
      %v465 = vadd.f32 %v378, %v464
      %466 = vmatmul.bf16.gmra.mxu0 %v358
      %v467 = vpop.f32.mrf.mxu0
      %v468 = vadd.f32 %v378, %v467
      %v469 = vpop.f32.mrf.mxu0
      %v470 = vadd.f32 %v378, %v469
      %471 = vmatmul.bf16.gmra.mxu0 %v359
      %v472 = vpop.f32.mrf.mxu0
      %v473 = vadd.f32 %v378, %v472
      %v474 = vpop.f32.mrf.mxu0
      %v475 = vadd.f32 %v378, %v474
      %476 = vdwg.mxu0
      %vm477 = vcmask 64512
      %v478 = vsel %vm477, %v438, -inf
      %479 = vmax.xlane.f32.xlu0 %v478
      %v480 = vpop.xlane.xlu0 %479
      %v481 = vsel %vm477, %v440, -inf
      %482 = vmax.xlane.f32.xlu0 %v481
      %v483 = vpop.xlane.xlu0 %482
      %v484 = vsel %vm477, %v443, -inf
      %485 = vmax.xlane.f32.xlu0 %v484
      %v486 = vpop.xlane.xlu0 %485
      %v487 = vsel %vm477, %v445, -inf
      %488 = vmax.xlane.f32.xlu0 %v487
      %v489 = vpop.xlane.xlu0 %488
      %v490 = vsel %vm477, %v448, -inf
      %491 = vmax.xlane.f32.xlu0 %v490
      %v492 = vpop.xlane.xlu0 %491
      %v493 = vsel %vm477, %v450, -inf
      %494 = vmax.xlane.f32.xlu0 %v493
      %v495 = vpop.xlane.xlu0 %494
      %v496 = vsel %vm477, %v453, -inf
      %497 = vmax.xlane.f32.xlu0 %v496
      %v498 = vpop.xlane.xlu0 %497
      %v499 = vsel %vm477, %v455, -inf
      %500 = vmax.xlane.f32.xlu0 %v499
      %v501 = vpop.xlane.xlu0 %500
      %v502 = vsel %vm477, %v458, -inf
      %503 = vmax.xlane.f32.xlu0 %v502
      %v504 = vpop.xlane.xlu0 %503
      %v505 = vsel %vm477, %v460, -inf
      %506 = vmax.xlane.f32.xlu0 %v505
      %v507 = vpop.xlane.xlu0 %506
      %v508 = vsel %vm477, %v463, -inf
      %509 = vmax.xlane.f32.xlu0 %v508
      %v510 = vpop.xlane.xlu0 %509
      %v511 = vsel %vm477, %v465, -inf
      %512 = vmax.xlane.f32.xlu0 %v511
      %v513 = vpop.xlane.xlu0 %512
      %v514 = vsel %vm477, %v468, -inf
      %515 = vmax.xlane.f32.xlu0 %v514
      %v516 = vpop.xlane.xlu0 %515
      %v517 = vsel %vm477, %v470, -inf
      %518 = vmax.xlane.f32.xlu0 %v517
      %v519 = vpop.xlane.xlu0 %518
      %v520 = vsel %vm477, %v473, -inf
      %521 = vmax.xlane.f32.xlu0 %v520
      %v522 = vpop.xlane.xlu0 %521
      %v523 = vsel %vm477, %v475, -inf
      %524 = vmax.xlane.f32.xlu0 %v523
      %v525 = vpop.xlane.xlu0 %524
      %v526 = vsub.f32 %v438, %v480
      %v527 = vsub.f32 %v440, %v483
      %v528 = vsub.f32 %v443, %v486
      %v529 = vsub.f32 %v445, %v489
      %v530 = vsub.f32 %v448, %v492
      %v531 = vsub.f32 %v450, %v495
      %v532 = vsub.f32 %v453, %v498
      %v533 = vsub.f32 %v455, %v501
      %v534 = vsub.f32 %v458, %v504
      %v535 = vsub.f32 %v460, %v507
      %v536 = vsub.f32 %v463, %v510
      %v537 = vsub.f32 %v465, %v513
      %v538 = vsub.f32 %v468, %v516
      %v539 = vsub.f32 %v470, %v519
      %v540 = vsub.f32 %v473, %v522
      %v541 = vsub.f32 %v475, %v525
      %v542 = vmul.f32 %v526, 1.442695
      %v543 = vpow.pop %v542
      %v544 = vmul.f32 %v527, 1.442695
      %v545 = vpow.pop %v544
      %v546 = vmul.f32 %v528, 1.442695
      %v547 = vpow.pop %v546
      %v548 = vmul.f32 %v529, 1.442695
      %v549 = vpow.pop %v548
      %v550 = vmul.f32 %v530, 1.442695
      %v551 = vpow.pop %v550
      %v552 = vmul.f32 %v531, 1.442695
      %v553 = vpow.pop %v552
      %v554 = vmul.f32 %v532, 1.442695
      %v555 = vpow.pop %v554
      %v556 = vmul.f32 %v533, 1.442695
      %v557 = vpow.pop %v556
      %v558 = vmul.f32 %v534, 1.442695
      %v559 = vpow.pop %v558
      %v560 = vmul.f32 %v535, 1.442695
      %v561 = vpow.pop %v560
      %v562 = vmul.f32 %v536, 1.442695
      %v563 = vpow.pop %v562
      %v564 = vmul.f32 %v537, 1.442695
      %v565 = vpow.pop %v564
      %v566 = vmul.f32 %v538, 1.442695
      %v567 = vpow.pop %v566
      %v568 = vmul.f32 %v539, 1.442695
      %v569 = vpow.pop %v568
      %v570 = vmul.f32 %v540, 1.442695
      %v571 = vpow.pop %v570
      %v572 = vmul.f32 %v541, 1.442695
      %v573 = vpow.pop %v572
      %v574 = vsel %vm477, %v543, 0.0
      %575 = vadd.xlane.f32.xlu0 %v574
      %v576 = vpop.xlane.xlu0 %575
      %v577 = vsel %vm477, %v545, 0.0
      %578 = vadd.xlane.f32.xlu0 %v577
      %v579 = vpop.xlane.xlu0 %578
      %v580 = vsel %vm477, %v547, 0.0
      %581 = vadd.xlane.f32.xlu0 %v580
      %v582 = vpop.xlane.xlu0 %581
      %v583 = vsel %vm477, %v549, 0.0
      %584 = vadd.xlane.f32.xlu0 %v583
      %v585 = vpop.xlane.xlu0 %584
      %v586 = vsel %vm477, %v551, 0.0
      %587 = vadd.xlane.f32.xlu0 %v586
      %v588 = vpop.xlane.xlu0 %587
      %v589 = vsel %vm477, %v553, 0.0
      %590 = vadd.xlane.f32.xlu0 %v589
      %v591 = vpop.xlane.xlu0 %590
      %v592 = vsel %vm477, %v555, 0.0
      %593 = vadd.xlane.f32.xlu0 %v592
      %v594 = vpop.xlane.xlu0 %593
      %v595 = vsel %vm477, %v557, 0.0
      %596 = vadd.xlane.f32.xlu0 %v595
      %v597 = vpop.xlane.xlu0 %596
      %v598 = vsel %vm477, %v559, 0.0
      %599 = vadd.xlane.f32.xlu0 %v598
      %v600 = vpop.xlane.xlu0 %599
      %v601 = vsel %vm477, %v561, 0.0
      %602 = vadd.xlane.f32.xlu0 %v601
      %v603 = vpop.xlane.xlu0 %602
      %v604 = vsel %vm477, %v563, 0.0
      %605 = vadd.xlane.f32.xlu0 %v604
      %v606 = vpop.xlane.xlu0 %605
      %v607 = vsel %vm477, %v565, 0.0
      %608 = vadd.xlane.f32.xlu0 %v607
      %v609 = vpop.xlane.xlu0 %608
      %v610 = vsel %vm477, %v567, 0.0
      %611 = vadd.xlane.f32.xlu0 %v610
      %v612 = vpop.xlane.xlu0 %611
      %v613 = vsel %vm477, %v569, 0.0
      %614 = vadd.xlane.f32.xlu0 %v613
      %v615 = vpop.xlane.xlu0 %614
      %v616 = vsel %vm477, %v571, 0.0
      %617 = vadd.xlane.f32.xlu0 %v616
      %v618 = vpop.xlane.xlu0 %617
      %v619 = vsel %vm477, %v573, 0.0
      %620 = vadd.xlane.f32.xlu0 %v619
      %v621 = vpop.xlane.xlu0 %620
      %v622 = vrcp.pop %v576
      %v623 = vmul.f32 %v576, %v622
      %v624 = vsub.f32 1.0, %v623
      %v625 = vmul.f32 %v622, %v624
      %v626 = vadd.f32 %v622, %v625
      %vm627 = vweird.f32 %v576
      %vm628 = vweird.f32 %v622
      %vm629 = vmor %vm627, %vm628
      %v630 = vsel %vm629, %v622, %v626
      %v631 = vand.u32 2147483647, %v576
      %vm632 = vcmp.eq.f32.partialorder %v631, 8.507059e+37
      %v633 = vand.u32 %v576, 2147483648
      %v634 = vor.u32 1.1754944e-38, %v633
      %v635 = vsel %vm632, %v634, %v630
      %v636 = vmul.f32 %v543, %v635
      %v637 = vrcp.pop %v579
      %v638 = vmul.f32 %v579, %v637
      %v639 = vsub.f32 1.0, %v638
      %v640 = vmul.f32 %v637, %v639
      %v641 = vadd.f32 %v637, %v640
      %vm642 = vweird.f32 %v579
      %vm643 = vweird.f32 %v637
      %vm644 = vmor %vm642, %vm643
      %v645 = vsel %vm644, %v637, %v641
      %v646 = vand.u32 2147483647, %v579
      %vm647 = vcmp.eq.f32.partialorder %v646, 8.507059e+37
      %v648 = vand.u32 %v579, 2147483648
      %v649 = vor.u32 1.1754944e-38, %v648
      %v650 = vsel %vm647, %v649, %v645
      %v651 = vmul.f32 %v545, %v650
      %v652 = vrcp.pop %v582
      %v653 = vmul.f32 %v582, %v652
      %v654 = vsub.f32 1.0, %v653
      %v655 = vmul.f32 %v652, %v654
      %v656 = vadd.f32 %v652, %v655
      %vm657 = vweird.f32 %v582
      %vm658 = vweird.f32 %v652
      %vm659 = vmor %vm657, %vm658
      %v660 = vsel %vm659, %v652, %v656
      %v661 = vand.u32 2147483647, %v582
      %vm662 = vcmp.eq.f32.partialorder %v661, 8.507059e+37
      %v663 = vand.u32 %v582, 2147483648
      %v664 = vor.u32 1.1754944e-38, %v663
      %v665 = vsel %vm662, %v664, %v660
      %v666 = vmul.f32 %v547, %v665
      %v667 = vrcp.pop %v585
      %v668 = vmul.f32 %v585, %v667
      %v669 = vsub.f32 1.0, %v668
      %v670 = vmul.f32 %v667, %v669
      %v671 = vadd.f32 %v667, %v670
      %vm672 = vweird.f32 %v585
      %vm673 = vweird.f32 %v667
      %vm674 = vmor %vm672, %vm673
      %v675 = vsel %vm674, %v667, %v671
      %v676 = vand.u32 2147483647, %v585
      %vm677 = vcmp.eq.f32.partialorder %v676, 8.507059e+37
      %v678 = vand.u32 %v585, 2147483648
      %v679 = vor.u32 1.1754944e-38, %v678
      %v680 = vsel %vm677, %v679, %v675
      %v681 = vmul.f32 %v549, %v680
      %v682 = vrcp.pop %v588
      %v683 = vmul.f32 %v588, %v682
      %v684 = vsub.f32 1.0, %v683
      %v685 = vmul.f32 %v682, %v684
      %v686 = vadd.f32 %v682, %v685
      %vm687 = vweird.f32 %v588
      %vm688 = vweird.f32 %v682
      %vm689 = vmor %vm687, %vm688
      %v690 = vsel %vm689, %v682, %v686
      %v691 = vand.u32 2147483647, %v588
      %vm692 = vcmp.eq.f32.partialorder %v691, 8.507059e+37
      %v693 = vand.u32 %v588, 2147483648
      %v694 = vor.u32 1.1754944e-38, %v693
      %v695 = vsel %vm692, %v694, %v690
      %v696 = vmul.f32 %v551, %v695
      %v697 = vrcp.pop %v591
      %v698 = vmul.f32 %v591, %v697
      %v699 = vsub.f32 1.0, %v698
      %v700 = vmul.f32 %v697, %v699
      %v701 = vadd.f32 %v697, %v700
      %vm702 = vweird.f32 %v591
      %vm703 = vweird.f32 %v697
      %vm704 = vmor %vm702, %vm703
      %v705 = vsel %vm704, %v697, %v701
      %v706 = vand.u32 2147483647, %v591
      %vm707 = vcmp.eq.f32.partialorder %v706, 8.507059e+37
      %v708 = vand.u32 %v591, 2147483648
      %v709 = vor.u32 1.1754944e-38, %v708
      %v710 = vsel %vm707, %v709, %v705
      %v711 = vmul.f32 %v553, %v710
      %v712 = vrcp.pop %v594
      %v713 = vmul.f32 %v594, %v712
      %v714 = vsub.f32 1.0, %v713
      %v715 = vmul.f32 %v712, %v714
      %v716 = vadd.f32 %v712, %v715
      %vm717 = vweird.f32 %v594
      %vm718 = vweird.f32 %v712
      %vm719 = vmor %vm717, %vm718
      %v720 = vsel %vm719, %v712, %v716
      %v721 = vand.u32 2147483647, %v594
      %vm722 = vcmp.eq.f32.partialorder %v721, 8.507059e+37
      %v723 = vand.u32 %v594, 2147483648
      %v724 = vor.u32 1.1754944e-38, %v723
      %v725 = vsel %vm722, %v724, %v720
      %v726 = vmul.f32 %v555, %v725
      %v727 = vrcp.pop %v597
      %v728 = vmul.f32 %v597, %v727
      %v729 = vsub.f32 1.0, %v728
      %v730 = vmul.f32 %v727, %v729
      %v731 = vadd.f32 %v727, %v730
      %vm732 = vweird.f32 %v597
      %vm733 = vweird.f32 %v727
      %vm734 = vmor %vm732, %vm733
      %v735 = vsel %vm734, %v727, %v731
      %v736 = vand.u32 2147483647, %v597
      %vm737 = vcmp.eq.f32.partialorder %v736, 8.507059e+37
      %v738 = vand.u32 %v597, 2147483648
      %v739 = vor.u32 1.1754944e-38, %v738
      %v740 = vsel %vm737, %v739, %v735
      %v741 = vmul.f32 %v557, %v740
      %v742 = vrcp.pop %v600
      %v743 = vmul.f32 %v600, %v742
      %v744 = vsub.f32 1.0, %v743
      %v745 = vmul.f32 %v742, %v744
      %v746 = vadd.f32 %v742, %v745
      %vm747 = vweird.f32 %v600
      %vm748 = vweird.f32 %v742
      %vm749 = vmor %vm747, %vm748
      %v750 = vsel %vm749, %v742, %v746
      %v751 = vand.u32 2147483647, %v600
      %vm752 = vcmp.eq.f32.partialorder %v751, 8.507059e+37
      %v753 = vand.u32 %v600, 2147483648
      %v754 = vor.u32 1.1754944e-38, %v753
      %v755 = vsel %vm752, %v754, %v750
      %v756 = vmul.f32 %v559, %v755
      %v757 = vrcp.pop %v603
      %v758 = vmul.f32 %v603, %v757
      %v759 = vsub.f32 1.0, %v758
      %v760 = vmul.f32 %v757, %v759
      %v761 = vadd.f32 %v757, %v760
      %vm762 = vweird.f32 %v603
      %vm763 = vweird.f32 %v757
      %vm764 = vmor %vm762, %vm763
      %v765 = vsel %vm764, %v757, %v761
      %v766 = vand.u32 2147483647, %v603
      %vm767 = vcmp.eq.f32.partialorder %v766, 8.507059e+37
      %v768 = vand.u32 %v603, 2147483648
      %v769 = vor.u32 1.1754944e-38, %v768
      %v770 = vsel %vm767, %v769, %v765
      %v771 = vmul.f32 %v561, %v770
      %v772 = vrcp.pop %v606
      %v773 = vmul.f32 %v606, %v772
      %v774 = vsub.f32 1.0, %v773
      %v775 = vmul.f32 %v772, %v774
      %v776 = vadd.f32 %v772, %v775
      %vm777 = vweird.f32 %v606
      %vm778 = vweird.f32 %v772
      %vm779 = vmor %vm777, %vm778
      %v780 = vsel %vm779, %v772, %v776
      %v781 = vand.u32 2147483647, %v606
      %vm782 = vcmp.eq.f32.partialorder %v781, 8.507059e+37
      %v783 = vand.u32 %v606, 2147483648
      %v784 = vor.u32 1.1754944e-38, %v783
      %v785 = vsel %vm782, %v784, %v780
      %v786 = vmul.f32 %v563, %v785
      %v787 = vrcp.pop %v609
      %v788 = vmul.f32 %v609, %v787
      %v789 = vsub.f32 1.0, %v788
      %v790 = vmul.f32 %v787, %v789
      %v791 = vadd.f32 %v787, %v790
      %vm792 = vweird.f32 %v609
      %vm793 = vweird.f32 %v787
      %vm794 = vmor %vm792, %vm793
      %v795 = vsel %vm794, %v787, %v791
      %v796 = vand.u32 2147483647, %v609
      %vm797 = vcmp.eq.f32.partialorder %v796, 8.507059e+37
      %v798 = vand.u32 %v609, 2147483648
      %v799 = vor.u32 1.1754944e-38, %v798
      %v800 = vsel %vm797, %v799, %v795
      %v801 = vmul.f32 %v565, %v800
      %v802 = vrcp.pop %v612
      %v803 = vmul.f32 %v612, %v802
      %v804 = vsub.f32 1.0, %v803
      %v805 = vmul.f32 %v802, %v804
      %v806 = vadd.f32 %v802, %v805
      %vm807 = vweird.f32 %v612
      %vm808 = vweird.f32 %v802
      %vm809 = vmor %vm807, %vm808
      %v810 = vsel %vm809, %v802, %v806
      %v811 = vand.u32 2147483647, %v612
      %vm812 = vcmp.eq.f32.partialorder %v811, 8.507059e+37
      %v813 = vand.u32 %v612, 2147483648
      %v814 = vor.u32 1.1754944e-38, %v813
      %v815 = vsel %vm812, %v814, %v810
      %v816 = vmul.f32 %v567, %v815
      %v817 = vrcp.pop %v615
      %v818 = vmul.f32 %v615, %v817
      %v819 = vsub.f32 1.0, %v818
      %v820 = vmul.f32 %v817, %v819
      %v821 = vadd.f32 %v817, %v820
      %vm822 = vweird.f32 %v615
      %vm823 = vweird.f32 %v817
      %vm824 = vmor %vm822, %vm823
      %v825 = vsel %vm824, %v817, %v821
      %v826 = vand.u32 2147483647, %v615
      %vm827 = vcmp.eq.f32.partialorder %v826, 8.507059e+37
      %v828 = vand.u32 %v615, 2147483648
      %v829 = vor.u32 1.1754944e-38, %v828
      %v830 = vsel %vm827, %v829, %v825
      %v831 = vmul.f32 %v569, %v830
      %v832 = vrcp.pop %v618
      %v833 = vmul.f32 %v618, %v832
      %v834 = vsub.f32 1.0, %v833
      %v835 = vmul.f32 %v832, %v834
      %v836 = vadd.f32 %v832, %v835
      %vm837 = vweird.f32 %v618
      %vm838 = vweird.f32 %v832
      %vm839 = vmor %vm837, %vm838
      %v840 = vsel %vm839, %v832, %v836
      %v841 = vand.u32 2147483647, %v618
      %vm842 = vcmp.eq.f32.partialorder %v841, 8.507059e+37
      %v843 = vand.u32 %v618, 2147483648
      %v844 = vor.u32 1.1754944e-38, %v843
      %v845 = vsel %vm842, %v844, %v840
      %v846 = vmul.f32 %v571, %v845
      %v847 = vrcp.pop %v621
      %v848 = vmul.f32 %v621, %v847
      %v849 = vsub.f32 1.0, %v848
      %v850 = vmul.f32 %v847, %v849
      %v851 = vadd.f32 %v847, %v850
      %vm852 = vweird.f32 %v621
      %vm853 = vweird.f32 %v847
      %vm854 = vmor %vm852, %vm853
      %v855 = vsel %vm854, %v847, %v851
      %v856 = vand.u32 2147483647, %v621
      %vm857 = vcmp.eq.f32.partialorder %v856, 8.507059e+37
      %v858 = vand.u32 %v621, 2147483648
      %v859 = vor.u32 1.1754944e-38, %v858
      %v860 = vsel %vm857, %v859, %v855
      %v861 = vmul.f32 %v573, %v860
      %862 = vst.msk [vmem:[%s226] sm:$0xff] %vm477, %v636
      %863 = vst.msk [vmem:[%s226 + $0x8] sm:$0xff] %vm477, %v651
      %864 = vst.msk [vmem:[%s226 + $0x10] sm:$0xff] %vm477, %v666
      %865 = vst.msk [vmem:[%s226 + $0x18] sm:$0xff] %vm477, %v681
      %866 = vst.msk [vmem:[%s226 + $0x20] sm:$0xff] %vm477, %v696
      %867 = vst.msk [vmem:[%s226 + $0x28] sm:$0xff] %vm477, %v711
      %868 = vst.msk [vmem:[%s226 + $0x30] sm:$0xff] %vm477, %v726
      %869 = vst.msk [vmem:[%s226 + $0x38] sm:$0xff] %vm477, %v741
      %870 = vst.msk [vmem:[%s226 + $0x40] sm:$0xff] %vm477, %v756
      %871 = vst.msk [vmem:[%s226 + $0x48] sm:$0xff] %vm477, %v771
      %872 = vst.msk [vmem:[%s226 + $0x50] sm:$0xff] %vm477, %v786
      %873 = vst.msk [vmem:[%s226 + $0x58] sm:$0xff] %vm477, %v801
      %874 = vst.msk [vmem:[%s226 + $0x60] sm:$0xff] %vm477, %v816
      %875 = vst.msk [vmem:[%s226 + $0x68] sm:$0xff] %vm477, %v831
      %876 = vst.msk [vmem:[%s226 + $0x70] sm:$0xff] %vm477, %v846
      %877 = vst.msk [vmem:[%s226 + $0x78] sm:$0xff] %vm477, %v861
      %s878 = smul.u32 16, %s16
      %p879 = scmp.lt.s32.totalorder %s878, 31
      %s880 = scalar_select %p879, %s878, 31
      %s881 = smul.addr %s880, 8
      %s882 = scalar_lea.vmem %s5, %s881
      // Predicated region
      $region41: #{policy_net_forward.1} parent=39 // pred_check
        %p883 = pneg %p144
      $region42: #{policy_net_forward.1} parent=39 // pred_check_branch
        %885 = sbr.rel (%p883) target = $region44
      $region43: #{policy_net_forward.1} parent=39 // pred_region
        %s886 = smul.u32 16, %s16
      $region44: #{policy_net_forward.1} parent=39 // pred_fallthru
        _
    $region40: #{policy_net_forward.1} parent=5 // pred_fallthru
      _
    %p887 = scmp.le.s32.totalorder 2, %s11
    // Predicated region
    $region45: #{policy_net_forward.1} parent=5 // pred_check
      %p888 = pneg %p887
    $region46: #{policy_net_forward.1} parent=5 // pred_check_branch
      %890 = sbr.rel (%p888) target = $region48
    $region47: #{policy_net_forward.1} parent=5 // pred_region
      %s891 = ssub.s32 %s11, 2
      // Predicated region
      $region49: #{policy_net_forward.1} parent=47 // pred_check
        %p892 = pneg %p150
      $region50: #{policy_net_forward.1} parent=47 // pred_check_branch
        %894 = sbr.rel (%p892) target = $region52
      $region51: #{policy_net_forward.1} parent=47 // pred_region
        %s895 = smul.u32 16, %s17
        %p896 = scmp.lt.s32.totalorder %s895, 31
        %s897 = scalar_select %p896, %s895, 31
        %s898 = smul.addr %s897, 8
        %s899 = scalar_lea.vmem %s5, %s898
      $region52: #{policy_net_forward.1} parent=47 // pred_fallthru
        _
    $region48: #{policy_net_forward.1} parent=5 // pred_fallthru
      _
  $region6: #{policy_net_forward.1} parent=0 // loop_footer
    %s15 = sadd.s32 1, %s11
  $region7: #{policy_net_forward.1} parent=0 // loop_footer_branch
    %10 = sbr.rel target = $region3
  $region8: #{policy_net_forward.1} parent=0 // loop_exit
    _

</llo_original>
